<compile_context>
chip_gen: v5e
topology: v5e:2x2
jax: 0.10.0
libtpu: 0.0.40
codegen_flags: <defaults>
</compile_context>

<pallas_src>
import jax
import jax.numpy as jnp
from jax.experimental import pallas as pl
from jax.experimental.pallas import tpu as pltpu

NUM_EMBEDDINGS = 48        # vocabulary rows (already a multiple of 8)
EMBED_DIM = 200            # logical embedding width
EMBED_DIM_PADDED = 256     # lane-dense width: 2 x 128 lanes
NUM_LOOKUPS = 2            # forward always embeds exactly two concept ids
OUT_ROWS_PADDED = 8        # min f32 sublane tile -> unmasked output stores


def _gather_kernel(idx_ref, table_ref, out_ref, sem_ref):
    # idx_ref:   SMEM, (NUM_LOOKUPS,) int32        -- lookup row ids
    # table_ref: HBM (pl.ANY), (48, 256) float32   -- full table, never staged
    # out_ref:   VMEM, (8, 256) float32            -- padded output tile
    # sem_ref:   DMA semaphores, (NUM_LOOKUPS,)

    # Zero the padding rows (disjoint from the DMA-written rows 0..1) so the
    # padded output block is fully defined before writeback.
    out_ref[pl.ds(NUM_LOOKUPS, OUT_ROWS_PADDED - NUM_LOOKUPS), :] = jnp.zeros(
        (OUT_ROWS_PADDED - NUM_LOOKUPS, EMBED_DIM_PADDED), dtype=out_ref.dtype
    )

    # Issue both row DMAs (HBM table row -> VMEM output row); they overlap.
    copies = []
    for i in range(NUM_LOOKUPS):  # tiny static trip count -> fully unrolled
        cp = pltpu.make_async_copy(
            table_ref.at[pl.ds(idx_ref[i], 1), :],
            out_ref.at[pl.ds(i, 1), :],
            sem_ref.at[i],
        )
        cp.start()
        copies.append(cp)
    for cp in copies:
        cp.wait()


@jax.jit
def embedding_lookup(table_padded: jax.Array, indices: jax.Array) -> jax.Array:
    """Gather rows `indices` from the lane-padded table; returns (2, 200)."""
    indices = jnp.clip(indices.astype(jnp.int32), 0, NUM_EMBEDDINGS - 1)
    padded = pl.pallas_call(
        _gather_kernel,
        out_shape=jax.ShapeDtypeStruct(
            (OUT_ROWS_PADDED, EMBED_DIM_PADDED), table_padded.dtype
        ),
        in_specs=[
            pl.BlockSpec(memory_space=pltpu.SMEM),  # indices (scalars)
            pl.BlockSpec(memory_space=pl.ANY),      # table stays in HBM
        ],
        out_specs=pl.BlockSpec(memory_space=pltpu.VMEM),
        scratch_shapes=[pltpu.SemaphoreType.DMA((NUM_LOOKUPS,))],
    )(indices, table_padded)
    # Slice the padding away: (8, 256) -> (2, 200).
    return padded[:NUM_LOOKUPS, :EMBED_DIM]


class Embedding:
    """JAX/Pallas equivalent of the PyTorch `Embedding` module."""

    def __init__(self, concepts_dict):
        self.concepts = concepts_dict
        # nn.Embedding(48, 200) default init: weight ~ N(0, 1).
        key = jax.random.PRNGKey(0)
        self.weight = jax.random.normal(
            key, (NUM_EMBEDDINGS, EMBED_DIM), dtype=jnp.float32
        )
        # Lane-padded copy (padded tail zero), built once — not per call.
        self.weight_padded = jnp.pad(
            self.weight, ((0, 0), (0, EMBED_DIM_PADDED - EMBED_DIM))
        )

    def __call__(self, x):
        con1, con2 = x
        # String -> id dict lookup is inherently host-side (Python strings).
        idx = jnp.array(
            [self.concepts[con1[0]], self.concepts[con2[0]]], dtype=jnp.int32
        )
        return embedding_lookup(self.weight_padded, idx)


if __name__ == "__main__":
    # Deterministic small concept vocabulary.
    concept_names = [f"concept_{i}" for i in range(NUM_EMBEDDINGS)]
    concepts_dict = {name: i for i, name in enumerate(concept_names)}

    model = Embedding(concepts_dict)

    # Forward input mirrors the PyTorch module: a pair of concept sequences,
    # where only element [0] of each is used.
    x = (["concept_3", "concept_7"], ["concept_41", "concept_3"])

    emb = model(x)
    emb = jax.block_until_ready(emb)

    # Sanity check against a pure-JAX reference gather.
    ref = model.weight[
        jnp.array([concepts_dict["concept_3"], concepts_dict["concept_41"]])
    ]
    assert emb.shape == (NUM_LOOKUPS, EMBED_DIM) and emb.dtype == jnp.float32
    assert bool(jnp.allclose(emb, ref))

    print("KERNEL_OK")
</pallas_src>

<mosaic_0001>
module attributes {stable_mosaic.version = 11 : i64} {
  func.func @_gather_kernel(%arg0: memref<2xi32, #tpu.memory_space<smem>>, %arg1: memref<48x256xf32, #tpu.memory_space<any>>, %arg2: memref<8x256xf32, #tpu.memory_space<vmem>>, %arg3: memref<2x!tpu.dma_semaphore, #tpu.memory_space<semaphore_mem>>) attributes {dimension_semantics = [], scalar_prefetch = 0 : i64, scratch_operands = 1 : i64, tpu.core_type = #tpu.core_type<tc>} {
    %cst = arith.constant 0.000000e+00 : f32
    %0 = vector.broadcast %cst : f32 to vector<6x256xf32>
    %c2 = arith.constant 2 : index
    %c0 = arith.constant 0 : index
    %1 = vector.load %arg2[%c2, %c0] : memref<8x256xf32, #tpu.memory_space<vmem>>, vector<6x256xf32>
    tpu.vector_store %arg2[%c2, %c0], %0 {strides = array<i32>} : memref<8x256xf32, #tpu.memory_space<vmem>>, vector<6x256xf32>,
    %c0_0 = arith.constant 0 : index
    %2 = memref.load %arg0[%c0_0] : memref<2xi32, #tpu.memory_space<smem>>
    %c0_i32 = arith.constant 0 : i32
    %c0_i32_1 = arith.constant 0 : i32
    %3 = tpu.memref_slice %arg1[%2, %c0_i32_1] : memref<48x256xf32, #tpu.memory_space<any>> -> memref<1x256xf32, #tpu.memory_space<any>>
    %c0_i32_2 = arith.constant 0 : i32
    %c0_i32_3 = arith.constant 0 : i32
    %4 = tpu.memref_slice %arg2[%c0_i32_2, %c0_i32_3] : memref<8x256xf32, #tpu.memory_space<vmem>> -> memref<1x256xf32, #tpu.memory_space<vmem>>
    %5 = tpu.memref_slice %arg3[%c0_i32] : memref<2x!tpu.dma_semaphore, #tpu.memory_space<semaphore_mem>> -> memref<1x!tpu.dma_semaphore, #tpu.memory_space<semaphore_mem>>
    %6 = tpu.memref_squeeze %5 : memref<1x!tpu.dma_semaphore, #tpu.memory_space<semaphore_mem>> -> memref<!tpu.dma_semaphore, #tpu.memory_space<semaphore_mem>>
    tpu.enqueue_dma source(%3 : memref<1x256xf32, #tpu.memory_space<any>>) target(%4 : memref<1x256xf32, #tpu.memory_space<vmem>>) target_semaphore(%6 : memref<!tpu.dma_semaphore, #tpu.memory_space<semaphore_mem>>)
    %c1 = arith.constant 1 : index
    %7 = memref.load %arg0[%c1] : memref<2xi32, #tpu.memory_space<smem>>
    %c1_i32 = arith.constant 1 : i32
    %c0_i32_4 = arith.constant 0 : i32
    %8 = tpu.memref_slice %arg1[%7, %c0_i32_4] : memref<48x256xf32, #tpu.memory_space<any>> -> memref<1x256xf32, #tpu.memory_space<any>>
    %c1_i32_5 = arith.constant 1 : i32
    %c0_i32_6 = arith.constant 0 : i32
    %9 = tpu.memref_slice %arg2[%c1_i32_5, %c0_i32_6] : memref<8x256xf32, #tpu.memory_space<vmem>> -> memref<1x256xf32, #tpu.memory_space<vmem>>
    %10 = tpu.memref_slice %arg3[%c1_i32] : memref<2x!tpu.dma_semaphore, #tpu.memory_space<semaphore_mem>> -> memref<1x!tpu.dma_semaphore, #tpu.memory_space<semaphore_mem>>
    %11 = tpu.memref_squeeze %10 : memref<1x!tpu.dma_semaphore, #tpu.memory_space<semaphore_mem>> -> memref<!tpu.dma_semaphore, #tpu.memory_space<semaphore_mem>>
    tpu.enqueue_dma source(%8 : memref<1x256xf32, #tpu.memory_space<any>>) target(%9 : memref<1x256xf32, #tpu.memory_space<vmem>>) target_semaphore(%11 : memref<!tpu.dma_semaphore, #tpu.memory_space<semaphore_mem>>)
    %c0_i32_7 = arith.constant 0 : i32
    %c0_i32_8 = arith.constant 0 : i32
    %12 = tpu.memref_slice %arg1[%2, %c0_i32_8] : memref<48x256xf32, #tpu.memory_space<any>> -> memref<1x256xf32, #tpu.memory_space<any>>
    %c0_i32_9 = arith.constant 0 : i32
    %c0_i32_10 = arith.constant 0 : i32
    %13 = tpu.memref_slice %arg2[%c0_i32_9, %c0_i32_10] : memref<8x256xf32, #tpu.memory_space<vmem>> -> memref<1x256xf32, #tpu.memory_space<vmem>>
    %14 = tpu.memref_slice %arg3[%c0_i32_7] : memref<2x!tpu.dma_semaphore, #tpu.memory_space<semaphore_mem>> -> memref<1x!tpu.dma_semaphore, #tpu.memory_space<semaphore_mem>>
    %15 = tpu.memref_squeeze %14 : memref<1x!tpu.dma_semaphore, #tpu.memory_space<semaphore_mem>> -> memref<!tpu.dma_semaphore, #tpu.memory_space<semaphore_mem>>
    tpu.wait_dma2 semaphore(%15 : memref<!tpu.dma_semaphore, #tpu.memory_space<semaphore_mem>>) src(%12 : memref<1x256xf32, #tpu.memory_space<any>>) dst(%13 : memref<1x256xf32, #tpu.memory_space<vmem>>)
    %c1_i32_11 = arith.constant 1 : i32
    %c0_i32_12 = arith.constant 0 : i32
    %16 = tpu.memref_slice %arg1[%7, %c0_i32_12] : memref<48x256xf32, #tpu.memory_space<any>> -> memref<1x256xf32, #tpu.memory_space<any>>
    %c1_i32_13 = arith.constant 1 : i32
    %c0_i32_14 = arith.constant 0 : i32
    %17 = tpu.memref_slice %arg2[%c1_i32_13, %c0_i32_14] : memref<8x256xf32, #tpu.memory_space<vmem>> -> memref<1x256xf32, #tpu.memory_space<vmem>>
    %18 = tpu.memref_slice %arg3[%c1_i32_11] : memref<2x!tpu.dma_semaphore, #tpu.memory_space<semaphore_mem>> -> memref<1x!tpu.dma_semaphore, #tpu.memory_space<semaphore_mem>>
    %19 = tpu.memref_squeeze %18 : memref<1x!tpu.dma_semaphore, #tpu.memory_space<semaphore_mem>> -> memref<!tpu.dma_semaphore, #tpu.memory_space<semaphore_mem>>
    tpu.wait_dma2 semaphore(%19 : memref<!tpu.dma_semaphore, #tpu.memory_space<semaphore_mem>>) src(%16 : memref<1x256xf32, #tpu.memory_space<any>>) dst(%17 : memref<1x256xf32, #tpu.memory_space<vmem>>)
    return
  }
}

</mosaic_0001>

<llo_original>
// kernel: embedding_lookup.1
$region0: #{embedding_lookup.1}
  #allocation0 [shape = 'u32[]', space=smem, size = 0x4, offset = 0x4, fixed_abs, tag = 'smem constant byte address 0x4 - core index']
  #allocation1 [shape = 'u32[72,128]{1,0:T(1,128)}', space=vmem, size = 0x9000, scoped, tag = 'internal scratch']
  #allocation2 [shape = 's32[2]{0}', space=sflag, size = 0x8, scoped, tag = 'scratch operand']
  #allocation5 [shape = 's32[]', space=sflag, size = 0x4, offset = 0, fixed_abs, tag = 'sflag constant byte address 0x0 - dummy sync flag']
  #allocation6 [shape = 's32[]', space=sflag, size = 0x4, offset = 0, fixed_abs, tag = 'sflag constant byte address 0x0 - dummy sync flag']
  %s0 = inlined_call_operand.vmem [shape: s32[2], index: 0, kind: input, shape index: {}]
  %s1 = inlined_call_operand.hbm [shape: f32[48,256], index: 1, kind: input, shape index: {}]
  %s2 = inlined_call_operand.vmem [shape: f32[8,256], index: 2, kind: output, shape index: {}]
  %s3 = sld [smem:[#allocation0]]
  $region18: #{embedding_lookup.1} parent=0
    _
  %s5 = ssub.s32 1, %s3
  %s6 = scalar_select 0, %s5, %s3
  $region1: #{embedding_lookup.1} parent=0
    #allocation3 [shape = 'u8[512]{0}', space=smem, size = 0x200, scoped, tag = 'input window, operand 0, single buffered']
    #allocation4 [shape = 's32[1]{0}', space=sflag, size = 0x4, scoped, tag = 'scoped memory for embedding_lookup.1']
    %7 = vsyncpa [#allocation4], 0
    // Predicated region
    $region2: #{embedding_lookup.1} parent=1 // pred_check
      _
    $region3: #{embedding_lookup.1} parent=1 // pred_check_branch
      %9 = sbr.rel (0) target = $region5
    $region4: #{embedding_lookup.1} parent=1 // pred_region
      %11 = vsyncadd [#allocation4], 0
      %s13 = sshll.u32 %s0, 4
      %s14 = int_to_ptr.vmem [resolvable:$true] %s13
      %16 = dma.vmem_to_smem %s14, 16, [#allocation3], [#allocation4]
    $region5: #{embedding_lookup.1} parent=1 // pred_fallthru
      _
    // Predicated region
    $region6: #{embedding_lookup.1} parent=1 // pred_check
      _
    $region7: #{embedding_lookup.1} parent=1 // pred_check_branch
      %18 = sbr.rel (0) target = $region9
    $region8: #{embedding_lookup.1} parent=1 // pred_region
      %20 = dma.done [#allocation4], 16
    $region9: #{embedding_lookup.1} parent=1 // pred_fallthru
      _
    %21 = sfence
    %22 = vst [vmem:[%s2] sm:$0xfc] 0.0
    %23 = vst [vmem:[%s2 + $0x8] sm:$0xfc] 0.0
    %s24 = sld [smem:[#allocation3]]
    %s25 = sshrl.u32 %s24, 3
    %s26 = sand.u32 %s24, 7
    %s27 = smul.u32 %s25, 16
    %s28 = sadd.s32 %s26, %s27
    %s29 = scalar_lea.hbm %s1, %s28
    %s30 = sshll.u32 %s29, 4
    %s31 = int_to_ptr.hbm [resolvable:$true] %s30
    %s32 = sshll.u32 %s2, 4
    %s33 = int_to_ptr.vmem [resolvable:$true] %s32
    %37 = dma.hbm_to_vmem [thread:$0]  %s31, 32, %s33, [#allocation2], 128, 128, 1
    %s38 = sld [smem:[#allocation3 + $0x1]]
    %s39 = sshrl.u32 %s38, 3
    %s40 = sand.u32 %s38, 7
    %s41 = smul.u32 %s39, 16
    %s42 = sadd.s32 %s40, %s41
    %s43 = scalar_lea.hbm %s1, %s42
    %s44 = scalar_lea.vmem %s2, 1
    %s45 = scalar_lea.sflag [#allocation2], 1
    %s46 = sshll.u32 %s43, 4
    %s47 = int_to_ptr.hbm [resolvable:$true] %s46
    %s48 = sshll.u32 %s44, 4
    %s49 = int_to_ptr.vmem [resolvable:$true] %s48
    %53 = dma.hbm_to_vmem [thread:$0]  %s47, 32, %s49, %s45, 128, 128, 1
    %s54 = smul.u32 1, 2
    %s55 = sshll.u32 %s54, 4
    %56 = dma.done [#allocation2], %s55
    %s57 = sshll.u32 %s54, 4
    %58 = dma.done %s45, %s57
    // Predicated region
    $region10: #{embedding_lookup.1} parent=1 // pred_check
      _
    $region11: #{embedding_lookup.1} parent=1 // pred_check_branch
      %60 = sbr.rel (0) target = $region13
    $region12: #{embedding_lookup.1} parent=1 // pred_region
      _
    $region13: #{embedding_lookup.1} parent=1 // pred_fallthru
      _
    // Predicated region
    $region14: #{embedding_lookup.1} parent=1 // pred_check
      _
    $region15: #{embedding_lookup.1} parent=1 // pred_check_branch
      %62 = sbr.rel (0) target = $region17
    $region16: #{embedding_lookup.1} parent=1 // pred_region
      _
    $region17: #{embedding_lookup.1} parent=1 // pred_fallthru
      _
    %63 = vsyncpa [#allocation4], 1
  %64 = vsyncmov [#allocation2]
  %s65 = vpop.sfrf %64
  %p66 = scmp.eq.s32.totalorder %s65, 0
  %p67 = pneg %p66
  %69 = shalt.err (%p67)
  %s70 = scalar_lea.sflag [#allocation2], 1
  %71 = vsyncmov %s70
  %s72 = vpop.sfrf %71
  %p73 = scmp.eq.s32.totalorder %s72, 0
  %p74 = pneg %p73
  %76 = shalt.err (%p74)

</llo_original>
